<compile_context>
chip_gen: v5e
topology: v5e:2x2
jax: 0.10.0
libtpu: 0.0.40
codegen_flags: <defaults>
</compile_context>

<pallas_src>
import functools

import jax
import jax.numpy as jnp
from jax.experimental import pallas as pl
from jax.experimental.pallas import tpu as pltpu


# ----------------------------------------------------------------------------
# Pallas kernel
# ----------------------------------------------------------------------------
def _auxdrop_kernel(xcat_ref, mask_ref, w0_ref, w1_ref, wh_ref, wo_ref, b_ref,
                    out_ref, *, L, n_aux_layer, qtd, n_classes, dropout_p):
    """Whole forward pass in one kernel.

    xcat_ref : (B, n_aux_feat + features)           concatenated input
    mask_ref : (B, n_aux_layer)                     AuxDrop mask (aux + non-aux)
    w0_ref   : (n_aux_feat + features, n_aux_layer) hidden_layers[0] weight
    w1_ref   : (n_aux_layer, qtd)                   hidden_layers[1] weight
    wh_ref   : (max(L-2,1), qtd, qtd)               hidden_layers[2..L-1] weights
    wo_ref   : ((L-1)*qtd, (L-1)*n_classes)         block-diag output weights
    b_ref    : (L+1, BW)                            padded bias slab
                 row i   -> hidden_layers[i] bias (i in 0..L-1)
                 row L   -> concat of output_layers biases
    out_ref  : (B, (L-1)*n_classes)                 lane-dense softmax slab
    """
    inv_keep = 1.0 / (1.0 - dropout_p)
    nc = n_classes

    x = xcat_ref[...]

    # hidden_layers[0] (aux layer) -> ReLU -> AuxDrop mask * 1/(1-p)
    b0 = b_ref[0:1, 0:n_aux_layer]
    h = jnp.dot(x, w0_ref[...], preferred_element_type=jnp.float32) + b0
    h = jnp.maximum(h, 0.0)
    h = h * (mask_ref[...] * inv_keep)              # hidden_connections[0]

    # hidden_layers[1] -> ReLU
    b1 = b_ref[1:2, 0:qtd]
    h = jnp.dot(h, w1_ref[...], preferred_element_type=jnp.float32) + b1
    h = jnp.maximum(h, 0.0)
    hiddens = [h]                                    # hidden_connections[1]

    # hidden_layers[2 .. L-1] -> ReLU
    for i in range(L - 2):
        bi = b_ref[2 + i:3 + i, 0:qtd]
        h = jnp.dot(h, wh_ref[i], preferred_element_type=jnp.float32) + bi
        h = jnp.maximum(h, 0.0)
        hiddens.append(h)                            # hidden_connections[2+i]

    # Fused output layers: one MXU push against the block-diagonal weight slab.
    hcat = jnp.concatenate(hiddens, axis=1)          # (B, (L-1)*qtd)
    bo = b_ref[L:L + 1, 0:(L - 1) * nc]
    logits = jnp.dot(hcat, wo_ref[...], preferred_element_type=jnp.float32) + bo

    # Per-layer softmax over each nc-wide lane block; single lane-dense store.
    parts = []
    for i in range(L - 1):
        blk = logits[:, i * nc:(i + 1) * nc]
        m = jnp.max(blk, axis=-1, keepdims=True)
        e = jnp.exp(blk - m)
        s = jnp.sum(e, axis=-1, keepdims=True)
        parts.append(e * pl.reciprocal(s, approx=True))
    out_ref[...] = jnp.concatenate(parts, axis=1)


# ----------------------------------------------------------------------------
# Parameter init (nn.Linear-style U(-1/sqrt(fan_in), 1/sqrt(fan_in))) + packing
# ----------------------------------------------------------------------------
def init_params(key, features_size, n_aux_feat, n_neuron_aux_layer, qtd, L,
                n_classes):
    dims = ([(features_size + n_aux_feat, n_neuron_aux_layer),
             (n_neuron_aux_layer, qtd)]
            + [(qtd, qtd)] * (L - 2)
            + [(qtd, n_classes)] * (L - 1))
    keys = jax.random.split(key, len(dims))
    ws, bs = [], []
    for k, (fi, fo) in zip(keys, dims):
        kw, kb = jax.random.split(k)
        bound = 1.0 / (fi ** 0.5)
        ws.append(jax.random.uniform(kw, (fi, fo), jnp.float32, -bound, bound))
        bs.append(jax.random.uniform(kb, (1, fo), jnp.float32, -bound, bound))
    hidden_ws, hidden_bs = ws[:L], bs[:L]
    out_ws, out_bs = ws[L:], bs[L:]
    return hidden_ws, hidden_bs, out_ws, out_bs


def pack_params(hidden_ws, hidden_bs, out_ws, out_bs, *, L, qtd, n_classes,
                n_neuron_aux_layer):
    nc = n_classes
    w0, w1 = hidden_ws[0], hidden_ws[1]
    if L > 2:
        wh = jnp.stack(hidden_ws[2:], axis=0)                     # (L-2, qtd, qtd)
    else:
        wh = jnp.zeros((1, qtd, qtd), jnp.float32)                # unused dummy

    # Block-diagonal output weight slab: ((L-1)*qtd, (L-1)*nc).
    wo_bd = jnp.zeros(((L - 1) * qtd, (L - 1) * nc), jnp.float32)
    for i, w in enumerate(out_ws):
        wo_bd = wo_bd.at[i * qtd:(i + 1) * qtd, i * nc:(i + 1) * nc].set(w)

    # Single padded bias slab, lane-aligned rows.
    bw = max(n_neuron_aux_layer, qtd, (L - 1) * nc)
    bw = ((bw + 127) // 128) * 128
    bias = jnp.zeros((L + 1, bw), jnp.float32)
    bias = bias.at[0, :n_neuron_aux_layer].set(hidden_bs[0][0])
    bias = bias.at[1, :qtd].set(hidden_bs[1][0])
    for i in range(L - 2):
        bias = bias.at[2 + i, :qtd].set(hidden_bs[2 + i][0])
    bias = bias.at[L, :(L - 1) * nc].set(
        jnp.concatenate([b[0] for b in out_bs], axis=0))
    return dict(w0=w0, w1=w1, wh=wh, wo_bd=wo_bd, bias=bias)


# ----------------------------------------------------------------------------
# Mask construction (glue; matches torch Binomial sampling semantics)
# ----------------------------------------------------------------------------
def make_auxdrop_mask(aux_mask, *, batch, n_neuron_aux_layer, dropout_p,
                      mask_key):
    n_aux_feat = aux_mask.shape[1]
    aux_p = (dropout_p * n_neuron_aux_layer
             - (n_aux_feat - jnp.sum(aux_mask))) / (n_neuron_aux_layer - n_aux_feat)
    keep_prob = jnp.clip(1.0 - aux_p, 0.0, 1.0)      # clamp: bernoulli needs [0,1]
    non_aux = jax.random.bernoulli(
        mask_key, keep_prob,
        (1, n_neuron_aux_layer - n_aux_feat)).astype(jnp.float32)
    non_aux = jnp.broadcast_to(non_aux,
                               (batch, n_neuron_aux_layer - n_aux_feat))
    return jnp.concatenate([aux_mask, non_aux], axis=1)


# ----------------------------------------------------------------------------
# Pallas wrapper
# ----------------------------------------------------------------------------
def auxdrop_forward(X, aux_feat, mask, packed, *, L, n_neuron_aux_layer, qtd,
                    n_classes, dropout_p):
    B = X.shape[0]
    xcat = jnp.concatenate([aux_feat, X], axis=1)

    kernel = functools.partial(_auxdrop_kernel, L=L,
                               n_aux_layer=n_neuron_aux_layer, qtd=qtd,
                               n_classes=n_classes, dropout_p=dropout_p)

    out_slab = pl.pallas_call(
        kernel,
        out_shape=jax.ShapeDtypeStruct((B, (L - 1) * n_classes), jnp.float32),
        in_specs=[pl.BlockSpec(memory_space=pltpu.MemorySpace.VMEM)] * 7,
        out_specs=pl.BlockSpec(memory_space=pltpu.MemorySpace.VMEM),
    )(xcat, mask, packed["w0"], packed["w1"], packed["wh"], packed["wo_bd"],
      packed["bias"])

    # (B, (L-1)*nc) -> (L-1, B, nc), matching torch.stack(output_class).
    return jnp.transpose(out_slab.reshape(B, L - 1, n_classes), (1, 0, 2))


# ----------------------------------------------------------------------------
# Pure-JAX reference (same math, unpacked params) for correctness checking
# ----------------------------------------------------------------------------
def reference_forward(X, aux_feat, mask, hidden_ws, hidden_bs, out_ws, out_bs,
                      *, L, dropout_p):
    x = jnp.concatenate([aux_feat, X], axis=1)
    h = jax.nn.relu(x @ hidden_ws[0] + hidden_bs[0])
    h = h * mask * (1.0 / (1.0 - dropout_p))
    hs = []
    for i in range(1, L):
        h = jax.nn.relu(h @ hidden_ws[i] + hidden_bs[i])
        hs.append(h)
    outs = [jax.nn.softmax(hs[i] @ out_ws[i] + out_bs[i], axis=-1)
            for i in range(L - 1)]
    return jnp.stack(outs, axis=0)


# ----------------------------------------------------------------------------
if __name__ == "__main__":
    # Small shapes consistent with the module; batch=8 fills f32 sublanes.
    features_size = 8
    n_aux_feat = 3
    max_num_hidden_layers = 4          # L
    qtd_neuron_per_hidden_layer = 32
    n_neuron_aux_layer = 64
    n_classes = 2
    batch_size = 8
    dropout_p = 0.5

    root = jax.random.PRNGKey(0)
    k_param, k_x, k_aux, k_mask, k_drop = jax.random.split(root, 5)

    hidden_ws, hidden_bs, out_ws, out_bs = init_params(
        k_param, features_size, n_aux_feat, n_neuron_aux_layer,
        qtd_neuron_per_hidden_layer, max_num_hidden_layers, n_classes)
    packed = pack_params(hidden_ws, hidden_bs, out_ws, out_bs,
                         L=max_num_hidden_layers,
                         qtd=qtd_neuron_per_hidden_layer, n_classes=n_classes,
                         n_neuron_aux_layer=n_neuron_aux_layer)

    X = jax.random.normal(k_x, (batch_size, features_size), jnp.float32)
    aux_feat = jax.random.normal(k_aux, (batch_size, n_aux_feat), jnp.float32)
    aux_mask = (jax.random.uniform(k_mask, (batch_size, n_aux_feat)) > 0.3
                ).astype(jnp.float32)

    mask = make_auxdrop_mask(aux_mask, batch=batch_size,
                             n_neuron_aux_layer=n_neuron_aux_layer,
                             dropout_p=dropout_p, mask_key=k_drop)

    preds = auxdrop_forward(X, aux_feat, mask, packed,
                            L=max_num_hidden_layers,
                            n_neuron_aux_layer=n_neuron_aux_layer,
                            qtd=qtd_neuron_per_hidden_layer,
                            n_classes=n_classes, dropout_p=dropout_p)
    preds = jax.block_until_ready(preds)

    assert preds.shape == (max_num_hidden_layers - 1, batch_size, n_classes)
    # Each softmax row sums to ~1 (loose tol: approx EUP reciprocal in kernel).
    assert jnp.allclose(jnp.sum(preds, axis=-1), 1.0, atol=2e-2)

    ref = reference_forward(X, aux_feat, mask, hidden_ws, hidden_bs, out_ws,
                            out_bs, L=max_num_hidden_layers,
                            dropout_p=dropout_p)
    assert jnp.allclose(preds, ref, atol=2e-2), "kernel/reference mismatch"

    print("KERNEL_OK")
</pallas_src>

<mosaic_0001>
module attributes {stable_mosaic.version = 11 : i64} {
  func.func @_auxdrop_kernel(%arg0: memref<8x11xf32, #tpu.memory_space<vmem>>, %arg1: memref<8x64xf32, #tpu.memory_space<vmem>>, %arg2: memref<11x64xf32, #tpu.memory_space<vmem>>, %arg3: memref<64x32xf32, #tpu.memory_space<vmem>>, %arg4: memref<2x32x32xf32, #tpu.memory_space<vmem>>, %arg5: memref<96x6xf32, #tpu.memory_space<vmem>>, %arg6: memref<5x128xf32, #tpu.memory_space<vmem>>, %arg7: memref<8x6xf32, #tpu.memory_space<vmem>>) attributes {dimension_semantics = [], scalar_prefetch = 0 : i64, scratch_operands = 0 : i64, tpu.core_type = #tpu.core_type<tc>} {
    %c0 = arith.constant 0 : index
    %c0_0 = arith.constant 0 : index
    %0 = vector.load %arg0[%c0, %c0_0] : memref<8x11xf32, #tpu.memory_space<vmem>>, vector<8x11xf32>
    %c0_1 = arith.constant 0 : index
    %c0_2 = arith.constant 0 : index
    %1 = vector.load %arg6[%c0_1, %c0_2] : memref<5x128xf32, #tpu.memory_space<vmem>>, vector<1x64xf32>
    %c0_3 = arith.constant 0 : index
    %c0_4 = arith.constant 0 : index
    %2 = vector.load %arg2[%c0_3, %c0_4] : memref<11x64xf32, #tpu.memory_space<vmem>>, vector<11x64xf32>
    %cst = arith.constant dense<0.000000e+00> : vector<8x64xf32>
    %3 = tpu.matmul %0, %2, %cst {dimension_numbers = #tpu.dot_dimension_numbers<[1], [0], [0], [1], [0, 0, 1, 1], [], []>} : vector<8x11xf32>, vector<11x64xf32>, vector<8x64xf32> -> vector<8x64xf32>
    %4 = vector.broadcast %1 : vector<1x64xf32> to vector<8x64xf32>
    %5 = arith.addf %3, %4 : vector<8x64xf32>
    %cst_5 = arith.constant 0.000000e+00 : f32
    %6 = vector.broadcast %cst_5 : f32 to vector<8x64xf32>
    %7 = arith.maximumf %5, %6 : vector<8x64xf32>
    %c0_6 = arith.constant 0 : index
    %c0_7 = arith.constant 0 : index
    %8 = vector.load %arg1[%c0_6, %c0_7] : memref<8x64xf32, #tpu.memory_space<vmem>>, vector<8x64xf32>
    %cst_8 = arith.constant 2.000000e+00 : f32
    %9 = vector.broadcast %cst_8 : f32 to vector<8x64xf32>
    %10 = arith.mulf %8, %9 : vector<8x64xf32>
    %11 = arith.mulf %7, %10 : vector<8x64xf32>
    %c1 = arith.constant 1 : index
    %c0_9 = arith.constant 0 : index
    %12 = vector.load %arg6[%c1, %c0_9] : memref<5x128xf32, #tpu.memory_space<vmem>>, vector<1x32xf32>
    %c0_10 = arith.constant 0 : index
    %c0_11 = arith.constant 0 : index
    %13 = vector.load %arg3[%c0_10, %c0_11] : memref<64x32xf32, #tpu.memory_space<vmem>>, vector<64x32xf32>
    %cst_12 = arith.constant dense<0.000000e+00> : vector<8x32xf32>
    %14 = tpu.matmul %11, %13, %cst_12 {dimension_numbers = #tpu.dot_dimension_numbers<[1], [0], [0], [1], [0, 0, 1, 1], [], []>} : vector<8x64xf32>, vector<64x32xf32>, vector<8x32xf32> -> vector<8x32xf32>
    %15 = vector.broadcast %12 : vector<1x32xf32> to vector<8x32xf32>
    %16 = arith.addf %14, %15 : vector<8x32xf32>
    %cst_13 = arith.constant 0.000000e+00 : f32
    %17 = vector.broadcast %cst_13 : f32 to vector<8x32xf32>
    %18 = arith.maximumf %16, %17 : vector<8x32xf32>
    %c2 = arith.constant 2 : index
    %c0_14 = arith.constant 0 : index
    %19 = vector.load %arg6[%c2, %c0_14] : memref<5x128xf32, #tpu.memory_space<vmem>>, vector<1x32xf32>
    %c0_15 = arith.constant 0 : index
    %c0_16 = arith.constant 0 : index
    %c0_17 = arith.constant 0 : index
    %20 = vector.load %arg4[%c0_15, %c0_16, %c0_17] : memref<2x32x32xf32, #tpu.memory_space<vmem>>, vector<1x32x32xf32>
    %21 = vector.shape_cast %20 : vector<1x32x32xf32> to vector<32x32xf32>
    %cst_18 = arith.constant dense<0.000000e+00> : vector<8x32xf32>
    %22 = tpu.matmul %18, %21, %cst_18 {dimension_numbers = #tpu.dot_dimension_numbers<[1], [0], [0], [1], [0, 0, 1, 1], [], []>} : vector<8x32xf32>, vector<32x32xf32>, vector<8x32xf32> -> vector<8x32xf32>
    %23 = vector.broadcast %19 : vector<1x32xf32> to vector<8x32xf32>
    %24 = arith.addf %22, %23 : vector<8x32xf32>
    %cst_19 = arith.constant 0.000000e+00 : f32
    %25 = vector.broadcast %cst_19 : f32 to vector<8x32xf32>
    %26 = arith.maximumf %24, %25 : vector<8x32xf32>
    %c3 = arith.constant 3 : index
    %c0_20 = arith.constant 0 : index
    %27 = vector.load %arg6[%c3, %c0_20] : memref<5x128xf32, #tpu.memory_space<vmem>>, vector<1x32xf32>
    %c1_21 = arith.constant 1 : index
    %c0_22 = arith.constant 0 : index
    %c0_23 = arith.constant 0 : index
    %28 = vector.load %arg4[%c1_21, %c0_22, %c0_23] : memref<2x32x32xf32, #tpu.memory_space<vmem>>, vector<1x32x32xf32>
    %29 = vector.shape_cast %28 : vector<1x32x32xf32> to vector<32x32xf32>
    %cst_24 = arith.constant dense<0.000000e+00> : vector<8x32xf32>
    %30 = tpu.matmul %26, %29, %cst_24 {dimension_numbers = #tpu.dot_dimension_numbers<[1], [0], [0], [1], [0, 0, 1, 1], [], []>} : vector<8x32xf32>, vector<32x32xf32>, vector<8x32xf32> -> vector<8x32xf32>
    %31 = vector.broadcast %27 : vector<1x32xf32> to vector<8x32xf32>
    %32 = arith.addf %30, %31 : vector<8x32xf32>
    %cst_25 = arith.constant 0.000000e+00 : f32
    %33 = vector.broadcast %cst_25 : f32 to vector<8x32xf32>
    %34 = arith.maximumf %32, %33 : vector<8x32xf32>
    %35 = tpu.concatenate %18, %26, %34 in 1 : vector<8x32xf32>, vector<8x32xf32>, vector<8x32xf32> -> vector<8x96xf32>
    %c4 = arith.constant 4 : index
    %c0_26 = arith.constant 0 : index
    %36 = vector.load %arg6[%c4, %c0_26] : memref<5x128xf32, #tpu.memory_space<vmem>>, vector<1x6xf32>
    %c0_27 = arith.constant 0 : index
    %c0_28 = arith.constant 0 : index
    %37 = vector.load %arg5[%c0_27, %c0_28] : memref<96x6xf32, #tpu.memory_space<vmem>>, vector<96x6xf32>
    %cst_29 = arith.constant dense<0.000000e+00> : vector<8x6xf32>
    %38 = tpu.matmul %35, %37, %cst_29 {dimension_numbers = #tpu.dot_dimension_numbers<[1], [0], [0], [1], [0, 0, 1, 1], [], []>} : vector<8x96xf32>, vector<96x6xf32>, vector<8x6xf32> -> vector<8x6xf32>
    %39 = vector.broadcast %36 : vector<1x6xf32> to vector<8x6xf32>
    %40 = arith.addf %38, %39 : vector<8x6xf32>
    %41 = vector.extract_strided_slice %40 {offsets = [0, 0], sizes = [8, 2], strides = [1, 1]} : vector<8x6xf32> to vector<8x2xf32>
    %cst_30 = arith.constant dense<0xFF800000> : vector<8xf32>
    %42 = vector.multi_reduction <maximumf>, %41, %cst_30 [1] : vector<8x2xf32> to vector<8xf32>
    %43 = vector.shape_cast %42 : vector<8xf32> to vector<8x1xf32>
    %44 = vector.broadcast %43 : vector<8x1xf32> to vector<8x2xf32>
    %45 = arith.subf %41, %44 : vector<8x2xf32>
    %46 = math.exp %45 : vector<8x2xf32>
    %cst_31 = arith.constant dense<0.000000e+00> : vector<8xf32>
    %47 = vector.multi_reduction <add>, %46, %cst_31 [1] : vector<8x2xf32> to vector<8xf32>
    %48 = vector.shape_cast %47 : vector<8xf32> to vector<8x1xf32>
    %49 = tpu.reciprocal %48 {approx = true} : vector<8x1xf32> -> vector<8x1xf32>
    %50 = vector.broadcast %49 : vector<8x1xf32> to vector<8x2xf32>
    %51 = arith.mulf %46, %50 : vector<8x2xf32>
    %52 = vector.extract_strided_slice %40 {offsets = [0, 2], sizes = [8, 2], strides = [1, 1]} : vector<8x6xf32> to vector<8x2xf32>
    %cst_32 = arith.constant dense<0xFF800000> : vector<8xf32>
    %53 = vector.multi_reduction <maximumf>, %52, %cst_32 [1] : vector<8x2xf32> to vector<8xf32>
    %54 = vector.shape_cast %53 : vector<8xf32> to vector<8x1xf32>
    %55 = vector.broadcast %54 : vector<8x1xf32> to vector<8x2xf32>
    %56 = arith.subf %52, %55 : vector<8x2xf32>
    %57 = math.exp %56 : vector<8x2xf32>
    %cst_33 = arith.constant dense<0.000000e+00> : vector<8xf32>
    %58 = vector.multi_reduction <add>, %57, %cst_33 [1] : vector<8x2xf32> to vector<8xf32>
    %59 = vector.shape_cast %58 : vector<8xf32> to vector<8x1xf32>
    %60 = tpu.reciprocal %59 {approx = true} : vector<8x1xf32> -> vector<8x1xf32>
    %61 = vector.broadcast %60 : vector<8x1xf32> to vector<8x2xf32>
    %62 = arith.mulf %57, %61 : vector<8x2xf32>
    %63 = vector.extract_strided_slice %40 {offsets = [0, 4], sizes = [8, 2], strides = [1, 1]} : vector<8x6xf32> to vector<8x2xf32>
    %cst_34 = arith.constant dense<0xFF800000> : vector<8xf32>
    %64 = vector.multi_reduction <maximumf>, %63, %cst_34 [1] : vector<8x2xf32> to vector<8xf32>
    %65 = vector.shape_cast %64 : vector<8xf32> to vector<8x1xf32>
    %66 = vector.broadcast %65 : vector<8x1xf32> to vector<8x2xf32>
    %67 = arith.subf %63, %66 : vector<8x2xf32>
    %68 = math.exp %67 : vector<8x2xf32>
    %cst_35 = arith.constant dense<0.000000e+00> : vector<8xf32>
    %69 = vector.multi_reduction <add>, %68, %cst_35 [1] : vector<8x2xf32> to vector<8xf32>
    %70 = vector.shape_cast %69 : vector<8xf32> to vector<8x1xf32>
    %71 = tpu.reciprocal %70 {approx = true} : vector<8x1xf32> -> vector<8x1xf32>
    %72 = vector.broadcast %71 : vector<8x1xf32> to vector<8x2xf32>
    %73 = arith.mulf %68, %72 : vector<8x2xf32>
    %74 = tpu.concatenate %51, %62, %73 in 1 : vector<8x2xf32>, vector<8x2xf32>, vector<8x2xf32> -> vector<8x6xf32>
    %c0_36 = arith.constant 0 : index
    %c0_37 = arith.constant 0 : index
    %75 = vector.load %arg7[%c0_36, %c0_37] : memref<8x6xf32, #tpu.memory_space<vmem>>, vector<8x6xf32>
    tpu.vector_store %arg7[%c0_36, %c0_37], %74 {strides = array<i32>} : memref<8x6xf32, #tpu.memory_space<vmem>>, vector<8x6xf32>,
    return
  }
}

</mosaic_0001>

<llo_original>
// kernel: tpu_custom_call.1
$region0: #{tpu_custom_call.1}
  #allocation0 [shape = 'u32[]', space=smem, size = 0x4, offset = 0x4, fixed_abs, tag = 'smem constant byte address 0x4 - core index']
  #allocation1 [shape = 'u32[72,128]{1,0:T(1,128)}', space=vmem, size = 0x9000, scoped, tag = 'internal scratch']
  %s0 = inlined_call_operand.vmem [shape: f32[8,11], index: 0, kind: input, shape index: {}]
  %s1 = inlined_call_operand.vmem [shape: f32[8,64], index: 1, kind: input, shape index: {}]
  %s2 = inlined_call_operand.vmem [shape: f32[11,64], index: 2, kind: input, shape index: {}]
  %s3 = inlined_call_operand.vmem [shape: f32[64,32], index: 3, kind: input, shape index: {}]
  %s4 = inlined_call_operand.vmem [shape: f32[2,32,32], index: 4, kind: input, shape index: {}]
  %s5 = inlined_call_operand.vmem [shape: f32[96,6], index: 5, kind: input, shape index: {}]
  %s6 = inlined_call_operand.vmem [shape: f32[5,128], index: 6, kind: input, shape index: {}]
  %s7 = inlined_call_operand.hbm [shape: f32[8,6], index: 7, kind: output, shape index: {}]
  %s8 = sld [smem:[#allocation0]]
  $region38: #{tpu_custom_call.1} parent=0
    _
  %s10 = ssub.s32 1, %s8
  %s11 = scalar_select 0, %s10, %s8
  $region1: #{tpu_custom_call.1} parent=0
    #allocation2 [shape = 'u8[4096]{0}', space=vmem, size = 0x1000, scoped, tag = 'output window, operand 0, single buffered']
    #allocation3 [shape = 's32[1]{0}', space=sflag, size = 0x4, scoped, tag = 'scoped memory for tpu_custom_call.1']
    %12 = vsyncpa [#allocation3], 0
    // Predicated region
    $region2: #{tpu_custom_call.1} parent=1 // pred_check
      _
    $region3: #{tpu_custom_call.1} parent=1 // pred_check_branch
      %14 = sbr.rel (0) target = $region5
    $region4: #{tpu_custom_call.1} parent=1 // pred_region
      _
    $region5: #{tpu_custom_call.1} parent=1 // pred_fallthru
      _
    // Predicated region
    $region6: #{tpu_custom_call.1} parent=1 // pred_check
      _
    $region7: #{tpu_custom_call.1} parent=1 // pred_check_branch
      %16 = sbr.rel (0) target = $region9
    $region8: #{tpu_custom_call.1} parent=1 // pred_region
      _
    $region9: #{tpu_custom_call.1} parent=1 // pred_fallthru
      _
    // Predicated region
    $region10: #{tpu_custom_call.1} parent=1 // pred_check
      _
    $region11: #{tpu_custom_call.1} parent=1 // pred_check_branch
      %18 = sbr.rel (0) target = $region13
    $region12: #{tpu_custom_call.1} parent=1 // pred_region
      _
    $region13: #{tpu_custom_call.1} parent=1 // pred_fallthru
      _
    // Predicated region
    $region14: #{tpu_custom_call.1} parent=1 // pred_check
      _
    $region15: #{tpu_custom_call.1} parent=1 // pred_check_branch
      %20 = sbr.rel (0) target = $region17
    $region16: #{tpu_custom_call.1} parent=1 // pred_region
      _
    $region17: #{tpu_custom_call.1} parent=1 // pred_fallthru
      _
    // Predicated region
    $region18: #{tpu_custom_call.1} parent=1 // pred_check
      _
    $region19: #{tpu_custom_call.1} parent=1 // pred_check_branch
      %22 = sbr.rel (0) target = $region21
    $region20: #{tpu_custom_call.1} parent=1 // pred_region
      _
    $region21: #{tpu_custom_call.1} parent=1 // pred_fallthru
      _
    // Predicated region
    $region22: #{tpu_custom_call.1} parent=1 // pred_check
      _
    $region23: #{tpu_custom_call.1} parent=1 // pred_check_branch
      %24 = sbr.rel (0) target = $region25
    $region24: #{tpu_custom_call.1} parent=1 // pred_region
      _
    $region25: #{tpu_custom_call.1} parent=1 // pred_fallthru
      _
    // Predicated region
    $region26: #{tpu_custom_call.1} parent=1 // pred_check
      _
    $region27: #{tpu_custom_call.1} parent=1 // pred_check_branch
      %26 = sbr.rel (0) target = $region29
    $region28: #{tpu_custom_call.1} parent=1 // pred_region
      _
    $region29: #{tpu_custom_call.1} parent=1 // pred_fallthru
      _
    %v27 = vld [vmem:[%s0] sm:$0xff]
    %v28 = vld [vmem:[%s6] sm:$0x1]
    %v29 = vld [vmem:[%s2] sm:$0xff]
    %v30 = vld [vmem:[%s2 + $0x8] sm:$0x7]
    %v31 = vperm.slane %v28, 0
    %vm32 = vcmask 89088
    %v34 = vsel %vm32, %v27, 0
    %vm36 = vcmask 1042432
    %v38 = vsel %vm36, %v30, 0
    %40 = vmatpush.msra.mxu0 0.0
    %41 = vmatpush.msra.mxu0 0.0
    %42 = vmatpush.msra.mxu0 0.0
    %43 = vmatpush.msra.mxu0 0.0
    %44 = vmatpush.msra.mxu0 0.0
    %45 = vmatpush.msra.mxu0 0.0
    %46 = vmatpush.msra.mxu0 0.0
    %47 = vmatpush.msra.mxu0 0.0
    %48 = vmatpush.msra.mxu0 0.0
    %49 = vmatpush.msra.mxu0 0.0
    %50 = vmatpush.msra.mxu0 0.0
    %51 = vmatpush.msra.mxu0 0.0
    %52 = vmatpush.msra.mxu0 0.0
    %53 = vmatpush.msra.mxu0 0.0
    %54 = vmatpush.msra.mxu0 %v38
    %55 = vmatpush.msra.mxu0 %v29
    %56 = vmatmul.f32.gmra.mxu0 %v34
    %v57 = vpop.f32.mrf.mxu0
    %v58 = vadd.f32 %v31, %v57
    %59 = vdwg.mxu0
    %v60 = vmax.f32 %v58, 0.0
    %v61 = vld [vmem:[%s1] sm:$0xff]
    %v62 = vmul.f32 %v61, 2.0
    %v63 = vmul.f32 %v60, %v62
    %v64 = vld [vmem:[%s6 + $0x1] sm:$0x1]
    %v65 = vld [vmem:[%s3] sm:$0xff]
    %v66 = vld [vmem:[%s3 + $0x8] sm:$0xff]
    %v67 = vld [vmem:[%s3 + $0x10] sm:$0xff]
    %v68 = vld [vmem:[%s3 + $0x18] sm:$0xff]
    %v69 = vld [vmem:[%s3 + $0x20] sm:$0xff]
    %v70 = vld [vmem:[%s3 + $0x28] sm:$0xff]
    %v71 = vld [vmem:[%s3 + $0x30] sm:$0xff]
    %v72 = vld [vmem:[%s3 + $0x38] sm:$0xff]
    %v73 = vperm.slane %v64, 0
    %vm74 = vcmask 523264
    %v76 = vsel %vm74, %v63, 0
    %78 = vmatpush.msra.mxu0 0.0
    %79 = vmatpush.msra.mxu0 0.0
    %80 = vmatpush.msra.mxu0 0.0
    %81 = vmatpush.msra.mxu0 0.0
    %82 = vmatpush.msra.mxu0 0.0
    %83 = vmatpush.msra.mxu0 0.0
    %84 = vmatpush.msra.mxu0 0.0
    %85 = vmatpush.msra.mxu0 0.0
    %86 = vmatpush.msra.mxu0 %v72
    %87 = vmatpush.msra.mxu0 %v71
    %88 = vmatpush.msra.mxu0 %v70
    %89 = vmatpush.msra.mxu0 %v69
    %90 = vmatpush.msra.mxu0 %v68
    %91 = vmatpush.msra.mxu0 %v67
    %92 = vmatpush.msra.mxu0 %v66
    %93 = vmatpush.msra.mxu0 %v65
    %94 = vmatmul.f32.gmra.mxu0 %v76
    %v95 = vpop.f32.mrf.mxu0
    %v96 = vadd.f32 %v73, %v95
    %97 = vdwg.mxu0
    %v98 = vmax.f32 %v96, 0.0
    %v99 = vld [vmem:[%s6 + $0x2] sm:$0x1]
    %v100 = vld [vmem:[%s4] sm:$0xff]
    %v101 = vld [vmem:[%s4 + $0x8] sm:$0xff]
    %v102 = vld [vmem:[%s4 + $0x10] sm:$0xff]
    %v103 = vld [vmem:[%s4 + $0x18] sm:$0xff]
    %v104 = vperm.slane %v99, 0
    %vm105 = vcmask 261120
    %v107 = vsel %vm105, %v98, 0
    %109 = vmatpush.msra.mxu0 0.0
    %110 = vmatpush.msra.mxu0 0.0
    %111 = vmatpush.msra.mxu0 0.0
    %112 = vmatpush.msra.mxu0 0.0
    %113 = vmatpush.msra.mxu0 0.0
    %114 = vmatpush.msra.mxu0 0.0
    %115 = vmatpush.msra.mxu0 0.0
    %116 = vmatpush.msra.mxu0 0.0
    %117 = vmatpush.msra.mxu0 0.0
    %118 = vmatpush.msra.mxu0 0.0
    %119 = vmatpush.msra.mxu0 0.0
    %120 = vmatpush.msra.mxu0 0.0
    %121 = vmatpush.msra.mxu0 %v103
    %122 = vmatpush.msra.mxu0 %v102
    %123 = vmatpush.msra.mxu0 %v101
    %124 = vmatpush.msra.mxu0 %v100
    %125 = vmatmul.f32.gmra.mxu0 %v107
    %v126 = vpop.f32.mrf.mxu0
    %v127 = vadd.f32 %v104, %v126
    %128 = vdwg.mxu0
    %v129 = vmax.f32 %v127, 0.0
    %v130 = vld [vmem:[%s6 + $0x3] sm:$0x1]
    %s131 = scalar_lea.vmem %s4, 32
    %v132 = vld [vmem:[%s131] sm:$0xff]
    %v133 = vld [vmem:[%s131 + $0x8] sm:$0xff]
    %v134 = vld [vmem:[%s131 + $0x10] sm:$0xff]
    %v135 = vld [vmem:[%s131 + $0x18] sm:$0xff]
    %v136 = vperm.slane %v130, 0
    %v138 = vsel %vm105, %v129, 0
    %140 = vmatpush.msra.mxu0 0.0
    %141 = vmatpush.msra.mxu0 0.0
    %142 = vmatpush.msra.mxu0 0.0
    %143 = vmatpush.msra.mxu0 0.0
    %144 = vmatpush.msra.mxu0 0.0
    %145 = vmatpush.msra.mxu0 0.0
    %146 = vmatpush.msra.mxu0 0.0
    %147 = vmatpush.msra.mxu0 0.0
    %148 = vmatpush.msra.mxu0 0.0
    %149 = vmatpush.msra.mxu0 0.0
    %150 = vmatpush.msra.mxu0 0.0
    %151 = vmatpush.msra.mxu0 0.0
    %152 = vmatpush.msra.mxu0 %v135
    %153 = vmatpush.msra.mxu0 %v134
    %154 = vmatpush.msra.mxu0 %v133
    %155 = vmatpush.msra.mxu0 %v132
    %156 = vmatmul.f32.gmra.mxu0 %v138
    %v157 = vpop.f32.mrf.mxu0
    %v158 = vadd.f32 %v136, %v157
    %159 = vdwg.mxu0
    %v160 = vmax.f32 %v158, 0.0
    %161 = vrot.lane.b32.xlu0 %v129, 32
    %v162 = vpop.permute.xlu0 %161
    %165 = vrot.lane.b32.xlu0 %v160, 64
    %v166 = vpop.permute.xlu0 %165
    %v168 = vsel %vm105, %v98, %v162
    %v169 = vsel %vm74, %v168, %v166
    %v170 = vld [vmem:[%s6 + $0x4] sm:$0x1]
    %v171 = vld [vmem:[%s5] sm:$0xff]
    %v172 = vld [vmem:[%s5 + $0x8] sm:$0xff]
    %v173 = vld [vmem:[%s5 + $0x10] sm:$0xff]
    %v174 = vld [vmem:[%s5 + $0x18] sm:$0xff]
    %v175 = vld [vmem:[%s5 + $0x20] sm:$0xff]
    %v176 = vld [vmem:[%s5 + $0x28] sm:$0xff]
    %v177 = vld [vmem:[%s5 + $0x30] sm:$0xff]
    %v178 = vld [vmem:[%s5 + $0x38] sm:$0xff]
    %v179 = vld [vmem:[%s5 + $0x40] sm:$0xff]
    %v180 = vld [vmem:[%s5 + $0x48] sm:$0xff]
    %v181 = vld [vmem:[%s5 + $0x50] sm:$0xff]
    %v182 = vld [vmem:[%s5 + $0x58] sm:$0xff]
    %v183 = vperm.slane %v170, 0
    %vm184 = vcmask 785408
    %v186 = vsel %vm184, %v169, 0
    %188 = vmatpush.msra.mxu0 0.0
    %189 = vmatpush.msra.mxu0 0.0
    %190 = vmatpush.msra.mxu0 0.0
    %191 = vmatpush.msra.mxu0 0.0
    %192 = vmatpush.msra.mxu0 %v182
    %193 = vmatpush.msra.mxu0 %v181
    %194 = vmatpush.msra.mxu0 %v180
    %195 = vmatpush.msra.mxu0 %v179
    %196 = vmatpush.msra.mxu0 %v178
    %197 = vmatpush.msra.mxu0 %v177
    %198 = vmatpush.msra.mxu0 %v176
    %199 = vmatpush.msra.mxu0 %v175
    %200 = vmatpush.msra.mxu0 %v174
    %201 = vmatpush.msra.mxu0 %v173
    %202 = vmatpush.msra.mxu0 %v172
    %203 = vmatpush.msra.mxu0 %v171
    %204 = vmatmul.f32.gmra.mxu0 %v186
    %v205 = vpop.f32.mrf.mxu0
    %v206 = vadd.f32 %v183, %v205
    %207 = vdwg.mxu0
    %vm208 = vcmask 15360
    %v209 = vsel %vm208, %v206, -inf
    %210 = vmax.xlane.f32.xlu0 %v209
    %v211 = vpop.xlane.xlu0 %210
    %v212 = vsub.f32 %v206, %v211
    %v213 = vmul.f32 %v212, 1.442695
    %v214 = vpow.pop %v213
    %v215 = vsel %vm208, %v214, 0.0
    %216 = vadd.xlane.f32.xlu0 %v215
    %v217 = vpop.xlane.xlu0 %216
    %v218 = vrcp.pop %v217
    %v219 = vmul.f32 %v214, %v218
    %vm220 = vcmask 31760
    %v221 = vsel %vm220, %v206, -inf
    %222 = vmax.xlane.f32.xlu0 %v221
    %v223 = vpop.xlane.xlu0 %222
    %v224 = vsub.f32 %v206, %v223
    %v225 = vmul.f32 %v224, 1.442695
    %v226 = vpow.pop %v225
    %228 = vrot.lane.b32.xlu0 %v226, 126
    %v229 = vpop.permute.xlu0 %228
    %v231 = vsel %vm208, %v229, 0.0
    %232 = vadd.xlane.f32.xlu0 %v231
    %v233 = vpop.xlane.xlu0 %232
    %v234 = vrcp.pop %v233
    %v235 = vmul.f32 %v226, %v234
    %vm236 = vcmask 48160
    %v237 = vsel %vm236, %v206, -inf
    %238 = vmax.xlane.f32.xlu0 %v237
    %v239 = vpop.xlane.xlu0 %238
    %v240 = vsub.f32 %v206, %v239
    %v241 = vmul.f32 %v240, 1.442695
    %v242 = vpow.pop %v241
    %244 = vrot.lane.b32.xlu0 %v242, 124
    %v245 = vpop.permute.xlu0 %244
    %v247 = vsel %vm208, %v245, 0.0
    %248 = vadd.xlane.f32.xlu0 %v247
    %v249 = vpop.xlane.xlu0 %248
    %v250 = vrcp.pop %v249
    %v251 = vmul.f32 %v242, %v250
    %v252 = vsel %vm208, %v219, %v235
    %vm253 = vcmask 31744
    %v254 = vsel %vm253, %v252, %v251
    %vm255 = vcmask 48128
    %256 = vst.msk [vmem:[#allocation2] sm:$0xff] %vm255, %v254
    // Predicated region
    $region30: #{tpu_custom_call.1} parent=1 // pred_check
      _
    $region31: #{tpu_custom_call.1} parent=1 // pred_check_branch
      %258 = sbr.rel (0) target = $region33
    $region32: #{tpu_custom_call.1} parent=1 // pred_region
      %260 = vsyncadd [#allocation3], 0
      %s262 = sshll.u32 [#allocation2], 4
      %s263 = int_to_ptr.vmem [resolvable:$true] %s262
      %s264 = sshll.u32 %s7, 4
      %s265 = int_to_ptr.hbm [resolvable:$true] %s264
      %267 = dma.vmem_to_hbm [thread:$0]  %s263, 128, %s265, [#allocation3]
    $region33: #{tpu_custom_call.1} parent=1 // pred_fallthru
      _
    // Predicated region
    $region34: #{tpu_custom_call.1} parent=1 // pred_check
      _
    $region35: #{tpu_custom_call.1} parent=1 // pred_check_branch
      %269 = sbr.rel (0) target = $region37
    $region36: #{tpu_custom_call.1} parent=1 // pred_region
      %271 = dma.done [#allocation3], 128
    $region37: #{tpu_custom_call.1} parent=1 // pred_fallthru
      _
    %272 = vsyncpa [#allocation3], 1

</llo_original>
